<compile_context>
chip_gen: v6e
topology: v6e:2x2x1
jax: 0.10.0
libtpu: 0.0.40
codegen_flags: <defaults>
</compile_context>

<pallas_src>
import jax
import jax.numpy as jnp
from jax.experimental import pallas as pl
from jax.experimental.pallas import tpu as pltpu


def _cim_attention_kernel(x_ref, y_ref, out_ref):
    # x_ref: (n1, d), y_ref: (n2, d), out_ref: (n1+n2, d) — batch squeezed.
    x = x_ref[...]                       # native dtype (bf16/f32)
    y = y_ref[...]
    n1 = x.shape[0]
    n2 = y.shape[0]

    # Single score matmul on the MXU, reused for both directions (M2 == M1^T).
    m1 = jnp.dot(x, y.T, preferred_element_type=jnp.float32)    # (n1, n2) f32
    m2 = m1.T                                                    # (n2, n1), XLU

    # ---- direction 1: attend X over Y ----
    m1_max = jnp.max(m1, axis=-1, keepdims=True)
    p1 = jnp.exp(m1 - m1_max)
    inv1 = pl.reciprocal(jnp.sum(p1, axis=-1, keepdims=True), approx=True)
    probs1 = (p1 * inv1).astype(y.dtype)                         # bf16-friendly PV
    o1 = jnp.dot(probs1, y, preferred_element_type=jnp.float32)  # (n1, d) f32
    out_ref[pl.ds(0, n1), :] = (o1 * x.astype(jnp.float32)).astype(out_ref.dtype)

    # ---- direction 2: attend Y over X ----
    m2_max = jnp.max(m2, axis=-1, keepdims=True)
    p2 = jnp.exp(m2 - m2_max)
    inv2 = pl.reciprocal(jnp.sum(p2, axis=-1, keepdims=True), approx=True)
    probs2 = (p2 * inv2).astype(x.dtype)
    o2 = jnp.dot(probs2, x, preferred_element_type=jnp.float32)  # (n2, d) f32
    out_ref[pl.ds(n1, n2), :] = (o2 * y.astype(jnp.float32)).astype(out_ref.dtype)


def cim_attention(X, Y):
    """X: (b, n1, d), Y: (b, n2, d) -> (b, n1+n2, d)."""
    b, n1, d = X.shape
    b2, n2, d2 = Y.shape
    assert b == b2 and d == d2

    # Advisory cost estimate: 3 dense matmuls + 2 softmaxes worth of exps.
    flops = 2 * b * (2 * n1 * n2 * d + n1 * n2 * d) + 4 * b * n1 * n2
    bytes_accessed = (X.size + Y.size + b * (n1 + n2) * d) * X.dtype.itemsize
    cost = pl.CostEstimate(flops=flops,
                           transcendentals=2 * b * n1 * n2,
                           bytes_accessed=bytes_accessed)

    out = pl.pallas_call(
        _cim_attention_kernel,
        out_shape=jax.ShapeDtypeStruct((b, n1 + n2, d), X.dtype),
        grid_spec=pltpu.PrefetchScalarGridSpec(
            num_scalar_prefetch=0,
            grid=(b,),
            in_specs=[
                # Leading batch dim squeezed (None) -> kernel sees 2-D tiles.
                pl.BlockSpec((None, n1, d), lambda i: (i, 0, 0)),
                pl.BlockSpec((None, n2, d), lambda i: (i, 0, 0)),
            ],
            out_specs=pl.BlockSpec((None, n1 + n2, d), lambda i: (i, 0, 0)),
        ),
        compiler_params=pltpu.CompilerParams(
            dimension_semantics=("parallel",)),
        cost_estimate=cost,
    )(X, Y)
    return out


def _reference(X, Y):
    # Pure-JAX reference mirroring the PyTorch forward exactly.
    M1 = jnp.einsum('bqd,bkd->bqk', X, Y)
    M2 = jnp.einsum('bqd,bkd->bqk', Y, X)
    N1 = jax.nn.softmax(M1, axis=2)
    N2 = jax.nn.softmax(M2, axis=2)
    O1 = jnp.einsum('bqk,bkd->bqd', N1, Y)
    O2 = jnp.einsum('bqk,bkd->bqd', N2, X)
    A1 = O1 * X
    A2 = O2 * Y
    return jnp.concatenate([A1, A2], axis=1)


if __name__ == "__main__":
    # Small shapes consistent with the module's (b, n1, d)/(b, n2, d) contract.
    # d=128 keeps the output lane-dense (unmasked vst), n1/n2 sublane-aligned.
    b, n1, n2, d = 2, 16, 32, 128
    key = jax.random.PRNGKey(0)
    kx, ky = jax.random.split(key)
    X = jax.random.normal(kx, (b, n1, d), dtype=jnp.float32)
    Y = jax.random.normal(ky, (b, n2, d), dtype=jnp.float32)

    out = cim_attention(X, Y)
    jax.block_until_ready(out)

    ref = _reference(X, Y)
    assert out.shape == (b, n1 + n2, d), out.shape
    # Approx reciprocal (EUP vrcp) introduces ~1e-4 relative error in the
    # softmax normalization, hence the loosened tolerance.
    assert jnp.allclose(out, ref, atol=5e-3, rtol=5e-3), "mismatch vs reference"

    print("KERNEL_OK")
</pallas_src>

<mosaic_0001>
module attributes {stable_mosaic.version = 11 : i64} {
  func.func @_cim_attention_kernel(%arg0: i32, %arg1: memref<1x16x128xf32, #tpu.memory_space<vmem>>, %arg2: memref<1x32x128xf32, #tpu.memory_space<vmem>>, %arg3: memref<1x48x128xf32, #tpu.memory_space<vmem>>) attributes {dimension_semantics = [#tpu.dimension_semantics<parallel>], iteration_bounds = array<i64: 2>, scalar_prefetch = 0 : i64, scratch_operands = 0 : i64, tpu.core_type = #tpu.core_type<tc>, window_params = [{transform_indices = @transform_0, window_bounds = array<i64: 1, 16, 128>}, {transform_indices = @transform_1, window_bounds = array<i64: 1, 32, 128>}, {transform_indices = @transform_2, window_bounds = array<i64: 1, 48, 128>}]} {
    %c0 = arith.constant 0 : index
    %c0_0 = arith.constant 0 : index
    %c0_1 = arith.constant 0 : index
    %0 = vector.load %arg1[%c0, %c0_0, %c0_1] : memref<1x16x128xf32, #tpu.memory_space<vmem>>, vector<1x16x128xf32>
    %1 = vector.shape_cast %0 : vector<1x16x128xf32> to vector<16x128xf32>
    %c0_2 = arith.constant 0 : index
    %c0_3 = arith.constant 0 : index
    %c0_4 = arith.constant 0 : index
    %2 = vector.load %arg2[%c0_2, %c0_3, %c0_4] : memref<1x32x128xf32, #tpu.memory_space<vmem>>, vector<1x32x128xf32>
    %3 = vector.shape_cast %2 : vector<1x32x128xf32> to vector<32x128xf32>
    %4 = tpu.transpose %3, [1, 0] : vector<32x128xf32> -> vector<128x32xf32>
    %cst = arith.constant dense<0.000000e+00> : vector<16x32xf32>
    %5 = tpu.matmul %1, %4, %cst {dimension_numbers = #tpu.dot_dimension_numbers<[1], [0], [0], [1], [0, 0, 1, 1], [], []>} : vector<16x128xf32>, vector<128x32xf32>, vector<16x32xf32> -> vector<16x32xf32>
    %6 = tpu.transpose %5, [1, 0] : vector<16x32xf32> -> vector<32x16xf32>
    %cst_5 = arith.constant dense<0xFF800000> : vector<16xf32>
    %7 = vector.multi_reduction <maximumf>, %5, %cst_5 [1] : vector<16x32xf32> to vector<16xf32>
    %8 = vector.shape_cast %7 : vector<16xf32> to vector<16x1xf32>
    %9 = vector.broadcast %8 : vector<16x1xf32> to vector<16x32xf32>
    %10 = arith.subf %5, %9 : vector<16x32xf32>
    %11 = math.exp %10 : vector<16x32xf32>
    %cst_6 = arith.constant dense<0.000000e+00> : vector<16xf32>
    %12 = vector.multi_reduction <add>, %11, %cst_6 [1] : vector<16x32xf32> to vector<16xf32>
    %13 = vector.shape_cast %12 : vector<16xf32> to vector<16x1xf32>
    %14 = tpu.reciprocal %13 {approx = true} : vector<16x1xf32> -> vector<16x1xf32>
    %15 = vector.broadcast %14 : vector<16x1xf32> to vector<16x32xf32>
    %16 = arith.mulf %11, %15 : vector<16x32xf32>
    %cst_7 = arith.constant dense<0.000000e+00> : vector<16x128xf32>
    %17 = tpu.matmul %16, %3, %cst_7 {dimension_numbers = #tpu.dot_dimension_numbers<[1], [0], [0], [1], [0, 0, 1, 1], [], []>} : vector<16x32xf32>, vector<32x128xf32>, vector<16x128xf32> -> vector<16x128xf32>
    %18 = arith.mulf %17, %1 : vector<16x128xf32>
    %c0_8 = arith.constant 0 : index
    %c0_9 = arith.constant 0 : index
    %c0_10 = arith.constant 0 : index
    %19 = vector.load %arg3[%c0_8, %c0_9, %c0_10] : memref<1x48x128xf32, #tpu.memory_space<vmem>>, vector<1x16x128xf32>
    %20 = vector.shape_cast %19 : vector<1x16x128xf32> to vector<16x128xf32>
    %21 = vector.shape_cast %18 : vector<16x128xf32> to vector<1x16x128xf32>
    tpu.vector_store %arg3[%c0_8, %c0_9, %c0_10], %21 {strides = array<i32>} : memref<1x48x128xf32, #tpu.memory_space<vmem>>, vector<1x16x128xf32>,
    %cst_11 = arith.constant dense<0xFF800000> : vector<32xf32>
    %22 = vector.multi_reduction <maximumf>, %6, %cst_11 [1] : vector<32x16xf32> to vector<32xf32>
    %23 = vector.shape_cast %22 : vector<32xf32> to vector<32x1xf32>
    %24 = vector.broadcast %23 : vector<32x1xf32> to vector<32x16xf32>
    %25 = arith.subf %6, %24 : vector<32x16xf32>
    %26 = math.exp %25 : vector<32x16xf32>
    %cst_12 = arith.constant dense<0.000000e+00> : vector<32xf32>
    %27 = vector.multi_reduction <add>, %26, %cst_12 [1] : vector<32x16xf32> to vector<32xf32>
    %28 = vector.shape_cast %27 : vector<32xf32> to vector<32x1xf32>
    %29 = tpu.reciprocal %28 {approx = true} : vector<32x1xf32> -> vector<32x1xf32>
    %30 = vector.broadcast %29 : vector<32x1xf32> to vector<32x16xf32>
    %31 = arith.mulf %26, %30 : vector<32x16xf32>
    %cst_13 = arith.constant dense<0.000000e+00> : vector<32x128xf32>
    %32 = tpu.matmul %31, %1, %cst_13 {dimension_numbers = #tpu.dot_dimension_numbers<[1], [0], [0], [1], [0, 0, 1, 1], [], []>} : vector<32x16xf32>, vector<16x128xf32>, vector<32x128xf32> -> vector<32x128xf32>
    %33 = arith.mulf %32, %3 : vector<32x128xf32>
    %c0_14 = arith.constant 0 : index
    %c16 = arith.constant 16 : index
    %c0_15 = arith.constant 0 : index
    %34 = vector.load %arg3[%c0_14, %c16, %c0_15] : memref<1x48x128xf32, #tpu.memory_space<vmem>>, vector<1x32x128xf32>
    %35 = vector.shape_cast %34 : vector<1x32x128xf32> to vector<32x128xf32>
    %36 = vector.shape_cast %33 : vector<32x128xf32> to vector<1x32x128xf32>
    tpu.vector_store %arg3[%c0_14, %c16, %c0_15], %36 {strides = array<i32>} : memref<1x48x128xf32, #tpu.memory_space<vmem>>, vector<1x32x128xf32>,
    return
  }
  func.func @transform_0(%arg0: i32) -> (i32, i32, i32) {
    %c0_i32 = arith.constant 0 : i32
    %c0_i32_0 = arith.constant 0 : i32
    %c0_i32_1 = arith.constant 0 : i32
    return %arg0, %c0_i32, %c0_i32_0 : i32, i32, i32
  }
  func.func @transform_1(%arg0: i32) -> (i32, i32, i32) {
    %c0_i32 = arith.constant 0 : i32
    %c0_i32_0 = arith.constant 0 : i32
    %c0_i32_1 = arith.constant 0 : i32
    return %arg0, %c0_i32, %c0_i32_0 : i32, i32, i32
  }
  func.func @transform_2(%arg0: i32) -> (i32, i32, i32) {
    %c0_i32 = arith.constant 0 : i32
    %c0_i32_0 = arith.constant 0 : i32
    %c0_i32_1 = arith.constant 0 : i32
    return %arg0, %c0_i32, %c0_i32_0 : i32, i32, i32
  }
}

</mosaic_0001>

<llo_original>
// kernel: tpu_custom_call.1
$region0: #{tpu_custom_call.1}
  #allocation0 [shape = 'u32[]', space=smem, size = 0x4, offset = 0x4, fixed_abs, tag = 'smem constant byte address 0x4 - core index']
  #allocation1 [shape = 'u32[144,128]{1,0:T(1,128)}', space=vmem, size = 0x12000, scoped, tag = 'internal scratch']
  %s0 = inlined_call_operand.hbm [shape: f32[2,16,128], index: 0, kind: input, shape index: {}]
  %s1 = inlined_call_operand.hbm [shape: f32[2,32,128], index: 1, kind: input, shape index: {}]
  %s2 = inlined_call_operand.hbm [shape: f32[2,48,128], index: 2, kind: output, shape index: {}]
  %s3 = sld [smem:[#allocation0]]
  $region49: #{tpu_custom_call.1} parent=0
    _
  %s5 = ssub.s32 1, %s3
  %s6 = scalar_select 0, %s5, %s3
  $region1: #{tpu_custom_call.1} parent=0
    #allocation2 [shape = 'u8[16384]{0}', space=vmem, size = 0x4000, scoped, tag = 'input window, operand 0']
    #allocation3 [shape = 's32[2]{0}', space=sflag, size = 0x8, scoped, tag = 'scoped memory for tpu_custom_call.1']
    #allocation4 [shape = 's32[2]{0}', space=sflag, size = 0x8, scoped, tag = 'scoped memory for tpu_custom_call.1']
    #allocation5 [shape = 'u8[32768]{0}', space=vmem, size = 0x8000, scoped, tag = 'input window, operand 1']
    #allocation6 [shape = 's32[2]{0}', space=sflag, size = 0x8, scoped, tag = 'scoped memory for tpu_custom_call.1']
    #allocation7 [shape = 'u8[49152]{0}', space=vmem, size = 0xc000, scoped, tag = 'output window, operand 0']
    %7 = vsyncpa [#allocation3], 0
    %s8 = scalar_lea.sflag [#allocation3], 1
    %9 = vsyncpa %s8, 0
    %10 = vsyncpa [#allocation6], 0
    %s11 = scalar_lea.sflag [#allocation6], 1
    %12 = vsyncpa %s11, 0
    %13 = vsyncpa [#allocation4], 0
    %s14 = scalar_lea.sflag [#allocation4], 1
    %15 = vsyncpa %s14, 0
    loop: start=0, step=1, limit=4
    $region2: #{tpu_custom_call.1} parent=1 // loop_pre_header
      _
    $region3: #{tpu_custom_call.1} parent=1 // loop_header
      %s17 = sphi 0, %s21
      %p18 = scmp.ge.s32.totalorder %s17, 4
      %s27 = sphi 0, %s29
      %s30 = sphi 0, %s27
      %s31 = sphi 0, %s30
      %s47 = sphi 0, %s31
      %s53 = sphi 0, %s55
      %s56 = sphi 0, %s53
      %s57 = sphi 0, %s56
      %s73 = sphi 0, %s57
      %s79 = sphi 0, %s81
      %s82 = sphi 0, %s79
      %s83 = sphi 0, %s82
      %s99 = sphi 0, %s83
    $region4: #{tpu_custom_call.1} parent=1 // loop_header_branch
      %20 = sbr.rel (%p18) target = $region8
    $region5: #{tpu_custom_call.1} parent=1 // loop_body
      %s22 = ssub.s32 %s17, 1
      %s23 = ssub.s32 %s17, 2
      %s24 = sadd.s32 %s17, 1
      %s25 = ssub.s32 %s17, %s24
      %p26 = scmp.eq.s32.totalorder %s25, 0
      %s28 = sadd.s32 %s27, 1
      %s29 = scalar_select %p26, %s27, %s28
      %p32 = pneg %p26
      %p33 = scmp.eq.s32.totalorder %s17, 1
      %p34 = por %p32, %p33
      %p35 = scmp.ne.s32.totalorder %s27, %s30
      %p36 = scmp.eq.s32.totalorder %s17, 0
      %p37 = por %p35, %p36
      %p38 = scmp.ne.s32.totalorder %s27, %s30
      %p39 = scmp.eq.s32.totalorder %s22, 1
      %p40 = por %p38, %p39
      %p41 = scmp.ne.s32.totalorder %s30, %s31
      %p42 = scmp.eq.s32.totalorder %s22, 0
      %p43 = por %p41, %p42
      %p44 = scmp.ne.s32.totalorder %s30, %s31
      %p45 = scmp.eq.s32.totalorder %s23, 1
      %p46 = por %p44, %p45
      %p48 = scmp.ne.s32.totalorder %s31, %s47
      %p49 = scmp.eq.s32.totalorder %s23, 0
      %p50 = por %p48, %p49
      %s51 = ssub.s32 %s17, %s24
      %p52 = scmp.eq.s32.totalorder %s51, 0
      %s54 = sadd.s32 %s53, 1
      %s55 = scalar_select %p52, %s53, %s54
      %p58 = pneg %p52
      %p59 = scmp.eq.s32.totalorder %s17, 1
      %p60 = por %p58, %p59
      %p61 = scmp.ne.s32.totalorder %s53, %s56
      %p62 = scmp.eq.s32.totalorder %s17, 0
      %p63 = por %p61, %p62
      %p64 = scmp.ne.s32.totalorder %s53, %s56
      %p65 = scmp.eq.s32.totalorder %s22, 1
      %p66 = por %p64, %p65
      %p67 = scmp.ne.s32.totalorder %s56, %s57
      %p68 = scmp.eq.s32.totalorder %s22, 0
      %p69 = por %p67, %p68
      %p70 = scmp.ne.s32.totalorder %s56, %s57
      %p71 = scmp.eq.s32.totalorder %s23, 1
      %p72 = por %p70, %p71
      %p74 = scmp.ne.s32.totalorder %s57, %s73
      %p75 = scmp.eq.s32.totalorder %s23, 0
      %p76 = por %p74, %p75
      %s77 = ssub.s32 %s17, %s24
      %p78 = scmp.eq.s32.totalorder %s77, 0
      %s80 = sadd.s32 %s79, 1
      %s81 = scalar_select %p78, %s79, %s80
      %p84 = pneg %p78
      %p85 = scmp.eq.s32.totalorder %s17, 1
      %p86 = por %p84, %p85
      %p87 = scmp.ne.s32.totalorder %s79, %s82
      %p88 = scmp.eq.s32.totalorder %s17, 0
      %p89 = por %p87, %p88
      %p90 = scmp.ne.s32.totalorder %s79, %s82
      %p91 = scmp.eq.s32.totalorder %s22, 1
      %p92 = por %p90, %p91
      %p93 = scmp.ne.s32.totalorder %s82, %s83
      %p94 = scmp.eq.s32.totalorder %s22, 0
      %p95 = por %p93, %p94
      %p96 = scmp.ne.s32.totalorder %s82, %s83
      %p97 = scmp.eq.s32.totalorder %s23, 1
      %p98 = por %p96, %p97
      %p100 = scmp.ne.s32.totalorder %s83, %s99
      %p101 = scmp.eq.s32.totalorder %s23, 0
      %p102 = por %p100, %p101
      %p103 = scmp.le.s32.totalorder 1, %s17
      %p104 = scmp.lt.s32.totalorder %s17, 3
      %p105 = pnand %p103, %p104
      %p106 = pneg %p105
      // Predicated region
      $region9: #{tpu_custom_call.1} parent=5 // pred_check
        _
      $region10: #{tpu_custom_call.1} parent=5 // pred_check_branch
        %108 = sbr.rel (%p105) target = $region12
      $region11: #{tpu_custom_call.1} parent=5 // pred_region
        %s109 = ssub.s32 %s17, 1
      $region12: #{tpu_custom_call.1} parent=5 // pred_fallthru
        _
      %p110 = scmp.lt.s32.totalorder %s17, 2
      // Predicated region
      $region13: #{tpu_custom_call.1} parent=5 // pred_check
        %p111 = pneg %p110
      $region14: #{tpu_custom_call.1} parent=5 // pred_check_branch
        %113 = sbr.rel (%p111) target = $region16
      $region15: #{tpu_custom_call.1} parent=5 // pred_region
        // Predicated region
        $region17: #{tpu_custom_call.1} parent=15 // pred_check
          %p114 = pneg %p37
        $region18: #{tpu_custom_call.1} parent=15 // pred_check_branch
          %116 = sbr.rel (%p114) target = $region20
        $region19: #{tpu_custom_call.1} parent=15 // pred_region
          %s117 = sand.u32 %s27, 1
          %s118 = scalar_lea.sflag [#allocation3], %s117
          %s119 = sand.u32 %s27, 1
          %s120 = smul.addr %s119, 16
          %s121 = scalar_lea.vmem [#allocation2], %s120
          %s123 = ssub.s32 256, 256
          %124 = vsyncadd %s118, %s123
          %s125 = smul.addr %s17, 2
          %s126 = smul.addr %s125, 128
          %s127 = scalar_lea.hbm %s0, %s126
          %s128 = sshll.u32 %s121, 4
          %s129 = int_to_ptr.vmem [resolvable:$true] %s128
          %134 = dma.hbm_to_vmem [thread:$0]  %s127, 256, %s129, %s118, 128, 128, 8
        $region20: #{tpu_custom_call.1} parent=15 // pred_fallthru
          _
        // Predicated region
        $region21: #{tpu_custom_call.1} parent=15 // pred_check
          %p135 = pneg %p63
        $region22: #{tpu_custom_call.1} parent=15 // pred_check_branch
          %137 = sbr.rel (%p135) target = $region24
        $region23: #{tpu_custom_call.1} parent=15 // pred_region
          %s138 = sand.u32 %s53, 1
          %s139 = scalar_lea.sflag [#allocation6], %s138
          %s140 = sand.u32 %s53, 1
          %s141 = smul.addr %s140, 32
          %s142 = scalar_lea.vmem [#allocation5], %s141
          %s144 = ssub.s32 512, 512
          %145 = vsyncadd %s139, %s144
          %s146 = smul.addr %s17, 4
          %s147 = smul.addr %s146, 128
          %s148 = scalar_lea.hbm %s1, %s147
          %s149 = sshll.u32 %s142, 4
          %s150 = int_to_ptr.vmem [resolvable:$true] %s149
          %155 = dma.hbm_to_vmem [thread:$0]  %s148, 512, %s150, %s139, 128, 128, 8
        $region24: #{tpu_custom_call.1} parent=15 // pred_fallthru
          _
      $region16: #{tpu_custom_call.1} parent=5 // pred_fallthru
        _
      %p156 = scmp.le.s32.totalorder 1, %s17
      %p157 = scmp.lt.s32.totalorder %s17, 3
      %p158 = pnand %p156, %p157
      %p159 = pneg %p158
      // Predicated region
      $region25: #{tpu_custom_call.1} parent=5 // pred_check
        _
      $region26: #{tpu_custom_call.1} parent=5 // pred_check_branch
        %161 = sbr.rel (%p158) target = $region28
      $region27: #{tpu_custom_call.1} parent=5 // pred_region
        %s162 = ssub.s32 %s17, 1
        %s163 = sand.u32 %s30, 1
        %s164 = scalar_lea.sflag [#allocation3], %s163
        %s165 = sand.u32 %s30, 1
        %s166 = smul.addr %s165, 16
        %s167 = scalar_lea.vmem [#allocation2], %s166
        // Predicated region
        $region29: #{tpu_custom_call.1} parent=27 // pred_check
          %p168 = pneg %p43
        $region30: #{tpu_custom_call.1} parent=27 // pred_check_branch
          %170 = sbr.rel (%p168) target = $region32
        $region31: #{tpu_custom_call.1} parent=27 // pred_region
          %171 = dma.done %s164, 256
        $region32: #{tpu_custom_call.1} parent=27 // pred_fallthru
          _
        %s172 = sand.u32 %s56, 1
        %s173 = scalar_lea.sflag [#allocation6], %s172
        %s174 = sand.u32 %s56, 1
        %s175 = smul.addr %s174, 32
        %s176 = scalar_lea.vmem [#allocation5], %s175
        // Predicated region
        $region33: #{tpu_custom_call.1} parent=27 // pred_check
          %p177 = pneg %p69
        $region34: #{tpu_custom_call.1} parent=27 // pred_check_branch
          %179 = sbr.rel (%p177) target = $region36
        $region35: #{tpu_custom_call.1} parent=27 // pred_region
          %180 = dma.done %s173, 512
        $region36: #{tpu_custom_call.1} parent=27 // pred_fallthru
          _
        %s181 = sand.u32 %s30, 1
        %s182 = scalar_lea.sflag [#allocation3], %s181
        %s183 = sand.u32 %s30, 1
        %s184 = smul.addr %s183, 16
        %s185 = scalar_lea.vmem [#allocation2], %s184
        %p186 = pneg %p43
        %p187 = pneg %p40
        %s188 = sand.u32 %s56, 1
        %s189 = scalar_lea.sflag [#allocation6], %s188
        %s190 = sand.u32 %s56, 1
        %s191 = smul.addr %s190, 32
        %s192 = scalar_lea.vmem [#allocation5], %s191
        %p193 = pneg %p69
        %p194 = pneg %p66
        %p195 = pneg %p95
        %p196 = pneg %p92
        %s197 = sand.u32 %s82, 1
        %s198 = scalar_lea.sflag [#allocation4], %s197
        %s199 = sand.u32 %s82, 1
        %s200 = smul.addr %s199, 48
        %s201 = scalar_lea.vmem [#allocation7], %s200
        %v202 = vld [vmem:[%s167] sm:$0xff]
        %v203 = vld [vmem:[%s167 + $0x8] sm:$0xff]
        %v204 = vld [vmem:[%s176] sm:$0xff]
        %v205 = vld [vmem:[%s176 + $0x8] sm:$0xff]
        %v206 = vld [vmem:[%s176 + $0x10] sm:$0xff]
        %v207 = vld [vmem:[%s176 + $0x18] sm:$0xff]
        %208 = vmatprep.subr.mxu0 0.0
        %209 = vmatpush1.xpose.msra.mxu0 0.0
        %210 = vmatprep.subr.mxu0 0.0
        %211 = vmatpush1.xpose.msra.mxu0 0.0
        %212 = vmatprep.subr.mxu0 0.0
        %213 = vmatpush1.xpose.msra.mxu0 0.0
        %214 = vmatprep.subr.mxu0 0.0
        %215 = vmatpush1.xpose.msra.mxu0 0.0
        %216 = vmatprep.subr.mxu0 0.0
        %217 = vmatpush1.xpose.msra.mxu0 0.0
        %218 = vmatprep.subr.mxu0 0.0
        %219 = vmatpush1.xpose.msra.mxu0 0.0
        %220 = vmatprep.subr.mxu0 0.0
        %221 = vmatpush1.xpose.msra.mxu0 0.0
        %222 = vmatprep.subr.mxu0 0.0
        %223 = vmatpush1.xpose.msra.mxu0 0.0
        %224 = vmatprep.subr.mxu0 0.0
        %225 = vmatpush1.xpose.msra.mxu0 0.0
        %226 = vmatprep.subr.mxu0 0.0
        %227 = vmatpush1.xpose.msra.mxu0 0.0
        %228 = vmatprep.subr.mxu0 0.0
        %229 = vmatpush1.xpose.msra.mxu0 0.0
        %230 = vmatprep.subr.mxu0 0.0
        %231 = vmatpush1.xpose.msra.mxu0 0.0
        %232 = vmatprep.subr.mxu0 0.0
        %233 = vmatpush1.xpose.msra.mxu0 %v207
        %234 = vmatprep.subr.mxu0 0.0
        %235 = vmatpush1.xpose.msra.mxu0 %v206
        %236 = vmatprep.subr.mxu0 0.0
        %237 = vmatpush1.xpose.msra.mxu0 %v205
        %238 = vmatprep.subr.mxu0 0.0
        %239 = vmatpush1.xpose.msra.mxu0 %v204
        %240 = vmatprep.subr.mxu0 0.0
        %241 = vmatpush2.xpose.msra.mxu0 0.0
        %242 = vmatprep.subr.mxu0 0.0
        %243 = vmatpush2.xpose.msra.mxu0 0.0
        %244 = vmatprep.subr.mxu0 0.0
        %245 = vmatpush2.xpose.msra.mxu0 0.0
        %246 = vmatprep.subr.mxu0 0.0
        %247 = vmatpush2.xpose.msra.mxu0 0.0
        %248 = vmatprep.subr.mxu0 0.0
        %249 = vmatpush2.xpose.msra.mxu0 0.0
        %250 = vmatprep.subr.mxu0 0.0
        %251 = vmatpush2.xpose.msra.mxu0 0.0
        %252 = vmatprep.subr.mxu0 0.0
        %253 = vmatpush2.xpose.msra.mxu0 0.0
        %254 = vmatprep.subr.mxu0 0.0
        %255 = vmatpush2.xpose.msra.mxu0 0.0
        %256 = vmatprep.subr.mxu0 0.0
        %257 = vmatpush2.xpose.msra.mxu0 0.0
        %258 = vmatprep.subr.mxu0 0.0
        %259 = vmatpush2.xpose.msra.mxu0 0.0
        %260 = vmatprep.subr.mxu0 0.0
        %261 = vmatpush2.xpose.msra.mxu0 0.0
        %262 = vmatprep.subr.mxu0 0.0
        %263 = vmatpush2.xpose.msra.mxu0 0.0
        %264 = vmatprep.subr.mxu0 0.0
        %265 = vmatpush2.xpose.msra.mxu0 0.0
        %266 = vmatprep.subr.mxu0 0.0
        %267 = vmatpush2.xpose.msra.mxu0 0.0
        %268 = vmatprep.subr.mxu0 0.0
        %269 = vmatpush2.xpose.msra.mxu0 0.0
        %270 = vmatprep.subr.mxu0 0.0
        %271 = vmatpush2.xpose.msra.mxu0 0.0
        %272 = vmatprep.mubr.f32.mxu0 0.0
        %273 = vmatmul.mubr.f32.gmra.mxu0 %v202
        %v274 = vpop.f32.mrf.mxu0
        %v275 = vadd.f32 0.0, %v274
        %v276 = vpop.f32.mrf.mxu0
        %277 = vmatprep.mubr.f32.mxu0 0.0
        %278 = vmatmul.mubr.f32.gmra.mxu0 %v203
        %v279 = vpop.f32.mrf.mxu0
        %v280 = vadd.f32 0.0, %v279
        %v281 = vpop.f32.mrf.mxu0
        %282 = vdwg.mxu0
        %283 = vxpose.xlu0.b32.start [1/16] %v275, 128
        %284 = vxpose.xlu0.b32.cont [2/16] %v280, 128
        %285 = vxpose.xlu0.b32.cont [3/16] 0.0, 128
        %286 = vxpose.xlu0.b32.cont [4/16] 0.0, 128
        %287 = vxpose.xlu0.b32.cont [5/16] 0.0, 128
        %288 = vxpose.xlu0.b32.cont [6/16] 0.0, 128
        %289 = vxpose.xlu0.b32.cont [7/16] 0.0, 128
        %290 = vxpose.xlu0.b32.cont [8/16] 0.0, 128
        %291 = vxpose.xlu0.b32.cont [9/16] 0.0, 128
        %292 = vxpose.xlu0.b32.cont [10/16] 0.0, 128
        %293 = vxpose.xlu0.b32.cont [11/16] 0.0, 128
        %294 = vxpose.xlu0.b32.cont [12/16] 0.0, 128
        %295 = vxpose.xlu0.b32.cont [13/16] 0.0, 128
        %296 = vxpose.xlu0.b32.cont [14/16] 0.0, 128
        %297 = vxpose.xlu0.b32.cont [15/16] 0.0, 128
        %298 = vxpose.xlu0.b32.end [16/16] 0.0, 128
        %v299 = vpop.trf.xlu0
        %v300 = vpop.trf.xlu0
        %v301 = vpop.trf.xlu0
        %v302 = vpop.trf.xlu0
        %v303 = vpop.trf.xlu0
        %v304 = vpop.trf.xlu0
        %v305 = vpop.trf.xlu0
        %v306 = vpop.trf.xlu0
        %v307 = vpop.trf.xlu0
        %v308 = vpop.trf.xlu0
        %v309 = vpop.trf.xlu0
        %v310 = vpop.trf.xlu0
        %v311 = vpop.trf.xlu0
        %v312 = vpop.trf.xlu0
        %v313 = vpop.trf.xlu0
        %v314 = vpop.trf.xlu0
        %vm315 = vcmask 261120
        %v316 = vsel %vm315, %v275, -inf
        %317 = vmax.xlane.f32.xlu0 %v316
        %v318 = vpop.xlane.xlu0 %317
        %v319 = vsel %vm315, %v280, -inf
        %320 = vmax.xlane.f32.xlu0 %v319
        %v321 = vpop.xlane.xlu0 %320
        %v322 = vsub.f32 %v275, %v318
        %v323 = vsub.f32 %v280, %v321
        %v324 = vmul.f32 %v322, 1.442695
        %v325 = vpow.pop %v324
        %v326 = vmul.f32 %v323, 1.442695
        %v327 = vpow.pop %v326
        %v328 = vsel %vm315, %v325, 0.0
        %329 = vadd.xlane.f32.xlu0 %v328
        %v330 = vpop.xlane.xlu0 %329
        %v331 = vsel %vm315, %v327, 0.0
        %332 = vadd.xlane.f32.xlu0 %v331
        %v333 = vpop.xlane.xlu0 %332
        %v334 = vrcp.pop %v330
        %v335 = vrcp.pop %v333
        %v336 = vmul.f32 %v325, %v334
        %v337 = vmul.f32 %v327, %v335
        %v339 = vsel %vm315, %v336, 0
        %v342 = vsel %vm315, %v337, 0
        %344 = vmatprep.subr.mxu0 0.0
        %345 = vmatpush1.msra.mxu0 0.0
        %346 = vmatprep.subr.mxu0 0.0
        %347 = vmatpush1.msra.mxu0 0.0
        %348 = vmatprep.subr.mxu0 0.0
        %349 = vmatpush1.msra.mxu0 0.0
        %350 = vmatprep.subr.mxu0 0.0
        %351 = vmatpush1.msra.mxu0 0.0
        %352 = vmatprep.subr.mxu0 0.0
        %353 = vmatpush1.msra.mxu0 0.0
        %354 = vmatprep.subr.mxu0 0.0
        %355 = vmatpush1.msra.mxu0 0.0
        %356 = vmatprep.subr.mxu0 0.0
        %357 = vmatpush1.msra.mxu0 0.0
        %358 = vmatprep.subr.mxu0 0.0
        %359 = vmatpush1.msra.mxu0 0.0
        %360 = vmatprep.subr.mxu0 0.0
        %361 = vmatpush1.msra.mxu0 0.0
        %362 = vmatprep.subr.mxu0 0.0
        %363 = vmatpush1.msra.mxu0 0.0
        %364 = vmatprep.subr.mxu0 0.0
        %365 = vmatpush1.msra.mxu0 0.0
        %366 = vmatprep.subr.mxu0 0.0
        %367 = vmatpush1.msra.mxu0 0.0
        %368 = vmatprep.subr.mxu0 0.0
        %369 = vmatpush1.msra.mxu0 %v207
        %370 = vmatprep.subr.mxu0 0.0
        %371 = vmatpush1.msra.mxu0 %v206
        %372 = vmatprep.subr.mxu0 0.0
        %373 = vmatpush1.msra.mxu0 %v205
        %374 = vmatprep.subr.mxu0 0.0
        %375 = vmatpush1.msra.mxu0 %v204
        %376 = vmatprep.subr.mxu0 0.0
        %377 = vmatpush2.msra.mxu0 0.0
        %378 = vmatprep.subr.mxu0 0.0
        %379 = vmatpush2.msra.mxu0 0.0
        %380 = vmatprep.subr.mxu0 0.0
        %381 = vmatpush2.msra.mxu0 0.0
        %382 = vmatprep.subr.mxu0 0.0
        %383 = vmatpush2.msra.mxu0 0.0
        %384 = vmatprep.subr.mxu0 0.0
        %385 = vmatpush2.msra.mxu0 0.0
        %386 = vmatprep.subr.mxu0 0.0
        %387 = vmatpush2.msra.mxu0 0.0
        %388 = vmatprep.subr.mxu0 0.0
        %389 = vmatpush2.msra.mxu0 0.0
        %390 = vmatprep.subr.mxu0 0.0
        %391 = vmatpush2.msra.mxu0 0.0
        %392 = vmatprep.subr.mxu0 0.0
        %393 = vmatpush2.msra.mxu0 0.0
        %394 = vmatprep.subr.mxu0 0.0
        %395 = vmatpush2.msra.mxu0 0.0
        %396 = vmatprep.subr.mxu0 0.0
        %397 = vmatpush2.msra.mxu0 0.0
        %398 = vmatprep.subr.mxu0 0.0
        %399 = vmatpush2.msra.mxu0 0.0
        %400 = vmatprep.subr.mxu0 0.0
        %401 = vmatpush2.msra.mxu0 0.0
        %402 = vmatprep.subr.mxu0 0.0
        %403 = vmatpush2.msra.mxu0 0.0
        %404 = vmatprep.subr.mxu0 0.0
        %405 = vmatpush2.msra.mxu0 0.0
        %406 = vmatprep.subr.mxu0 0.0
        %407 = vmatpush2.msra.mxu0 0.0
        %408 = vmatprep.mubr.f32.mxu0 0.0
        %409 = vmatmul.mubr.f32.gmra.mxu0 %v339
        %v410 = vpop.f32.mrf.mxu0
        %v411 = vadd.f32 0.0, %v410
        %v412 = vpop.f32.mrf.mxu0
        %413 = vmatprep.mubr.f32.mxu0 0.0
        %414 = vmatmul.mubr.f32.gmra.mxu0 %v342
        %v415 = vpop.f32.mrf.mxu0
        %v416 = vadd.f32 0.0, %v415
        %v417 = vpop.f32.mrf.mxu0
        %418 = vdwg.mxu0
        %v419 = vmul.f32 %v411, %v202
        %v420 = vmul.f32 %v416, %v203
        %421 = vst [vmem:[%s201] sm:$0xff] %v419
        %422 = vst [vmem:[%s201 + $0x8] sm:$0xff] %v420
        %vm423 = vcmask 130048
        %v424 = vsel %vm423, %v299, -inf
        %425 = vmax.xlane.f32.xlu0 %v424
        %v426 = vpop.xlane.xlu0 %425
        %v427 = vsel %vm423, %v300, -inf
        %428 = vmax.xlane.f32.xlu0 %v427
        %v429 = vpop.xlane.xlu0 %428
        %v430 = vsel %vm423, %v301, -inf
        %431 = vmax.xlane.f32.xlu0 %v430
        %v432 = vpop.xlane.xlu0 %431
        %v433 = vsel %vm423, %v302, -inf
        %434 = vmax.xlane.f32.xlu0 %v433
        %v435 = vpop.xlane.xlu0 %434
        %v436 = vsub.f32 %v299, %v426
        %v437 = vsub.f32 %v300, %v429
        %v438 = vsub.f32 %v301, %v432
        %v439 = vsub.f32 %v302, %v435
        %v440 = vmul.f32 %v436, 1.442695
        %v441 = vpow.pop %v440
        %v442 = vmul.f32 %v437, 1.442695
        %v443 = vpow.pop %v442
        %v444 = vmul.f32 %v438, 1.442695
        %v445 = vpow.pop %v444
        %v446 = vmul.f32 %v439, 1.442695
        %v447 = vpow.pop %v446
        %v448 = vsel %vm423, %v441, 0.0
        %449 = vadd.xlane.f32.xlu0 %v448
        %v450 = vpop.xlane.xlu0 %449
        %v451 = vsel %vm423, %v443, 0.0
        %452 = vadd.xlane.f32.xlu0 %v451
        %v453 = vpop.xlane.xlu0 %452
        %v454 = vsel %vm423, %v445, 0.0
        %455 = vadd.xlane.f32.xlu0 %v454
        %v456 = vpop.xlane.xlu0 %455
        %v457 = vsel %vm423, %v447, 0.0
        %458 = vadd.xlane.f32.xlu0 %v457
        %v459 = vpop.xlane.xlu0 %458
        %v460 = vrcp.pop %v450
        %v461 = vrcp.pop %v453
        %v462 = vrcp.pop %v456
        %v463 = vrcp.pop %v459
        %v464 = vmul.f32 %v441, %v460
        %v465 = vmul.f32 %v443, %v461
        %v466 = vmul.f32 %v445, %v462
        %v467 = vmul.f32 %v447, %v463
        %v469 = vsel %vm423, %v464, 0
        %v472 = vsel %vm423, %v465, 0
        %v475 = vsel %vm423, %v466, 0
        %v478 = vsel %vm423, %v467, 0
        %480 = vmatprep.subr.mxu0 0.0
        %481 = vmatpush1.msra.mxu0 0.0
        %482 = vmatprep.subr.mxu0 0.0
        %483 = vmatpush1.msra.mxu0 0.0
        %484 = vmatprep.subr.mxu0 0.0
        %485 = vmatpush1.msra.mxu0 0.0
        %486 = vmatprep.subr.mxu0 0.0
        %487 = vmatpush1.msra.mxu0 0.0
        %488 = vmatprep.subr.mxu0 0.0
        %489 = vmatpush1.msra.mxu0 0.0
        %490 = vmatprep.subr.mxu0 0.0
        %491 = vmatpush1.msra.mxu0 0.0
        %492 = vmatprep.subr.mxu0 0.0
        %493 = vmatpush1.msra.mxu0 0.0
        %494 = vmatprep.subr.mxu0 0.0
        %495 = vmatpush1.msra.mxu0 0.0
        %496 = vmatprep.subr.mxu0 0.0
        %497 = vmatpush1.msra.mxu0 0.0
        %498 = vmatprep.subr.mxu0 0.0
        %499 = vmatpush1.msra.mxu0 0.0
        %500 = vmatprep.subr.mxu0 0.0
        %501 = vmatpush1.msra.mxu0 0.0
        %502 = vmatprep.subr.mxu0 0.0
        %503 = vmatpush1.msra.mxu0 0.0
        %504 = vmatprep.subr.mxu0 0.0
        %505 = vmatpush1.msra.mxu0 0.0
        %506 = vmatprep.subr.mxu0 0.0
        %507 = vmatpush1.msra.mxu0 0.0
        %508 = vmatprep.subr.mxu0 0.0
        %509 = vmatpush1.msra.mxu0 %v203
        %510 = vmatprep.subr.mxu0 0.0
        %511 = vmatpush1.msra.mxu0 %v202
        %512 = vmatprep.subr.mxu0 0.0
        %513 = vmatpush2.msra.mxu0 0.0
        %514 = vmatprep.subr.mxu0 0.0
        %515 = vmatpush2.msra.mxu0 0.0
        %516 = vmatprep.subr.mxu0 0.0
        %517 = vmatpush2.msra.mxu0 0.0
        %518 = vmatprep.subr.mxu0 0.0
        %519 = vmatpush2.msra.mxu0 0.0
        %520 = vmatprep.subr.mxu0 0.0
        %521 = vmatpush2.msra.mxu0 0.0
        %522 = vmatprep.subr.mxu0 0.0
        %523 = vmatpush2.msra.mxu0 0.0
        %524 = vmatprep.subr.mxu0 0.0
        %525 = vmatpush2.msra.mxu0 0.0
        %526 = vmatprep.subr.mxu0 0.0
        %527 = vmatpush2.msra.mxu0 0.0
        %528 = vmatprep.subr.mxu0 0.0
        %529 = vmatpush2.msra.mxu0 0.0
        %530 = vmatprep.subr.mxu0 0.0
        %531 = vmatpush2.msra.mxu0 0.0
        %532 = vmatprep.subr.mxu0 0.0
        %533 = vmatpush2.msra.mxu0 0.0
        %534 = vmatprep.subr.mxu0 0.0
        %535 = vmatpush2.msra.mxu0 0.0
        %536 = vmatprep.subr.mxu0 0.0
        %537 = vmatpush2.msra.mxu0 0.0
        %538 = vmatprep.subr.mxu0 0.0
        %539 = vmatpush2.msra.mxu0 0.0
        %540 = vmatprep.subr.mxu0 0.0
        %541 = vmatpush2.msra.mxu0 0.0
        %542 = vmatprep.subr.mxu0 0.0
        %543 = vmatpush2.msra.mxu0 0.0
        %544 = vmatprep.mubr.f32.mxu0 0.0
        %545 = vmatmul.mubr.f32.gmra.mxu0 %v469
        %v546 = vpop.f32.mrf.mxu0
        %v547 = vadd.f32 0.0, %v546
        %v548 = vpop.f32.mrf.mxu0
        %549 = vmatprep.mubr.f32.mxu0 0.0
        %550 = vmatmul.mubr.f32.gmra.mxu0 %v472
        %v551 = vpop.f32.mrf.mxu0
        %v552 = vadd.f32 0.0, %v551
        %v553 = vpop.f32.mrf.mxu0
        %554 = vmatprep.mubr.f32.mxu0 0.0
        %555 = vmatmul.mubr.f32.gmra.mxu0 %v475
        %v556 = vpop.f32.mrf.mxu0
        %v557 = vadd.f32 0.0, %v556
        %v558 = vpop.f32.mrf.mxu0
        %559 = vmatprep.mubr.f32.mxu0 0.0
        %560 = vmatmul.mubr.f32.gmra.mxu0 %v478
        %v561 = vpop.f32.mrf.mxu0
        %v562 = vadd.f32 0.0, %v561
        %v563 = vpop.f32.mrf.mxu0
        %564 = vdwg.mxu0
        %v565 = vmul.f32 %v547, %v204
        %v566 = vmul.f32 %v552, %v205
        %v567 = vmul.f32 %v557, %v206
        %v568 = vmul.f32 %v562, %v207
        %569 = vst [vmem:[%s201 + $0x10] sm:$0xff] %v565
        %570 = vst [vmem:[%s201 + $0x18] sm:$0xff] %v566
        %571 = vst [vmem:[%s201 + $0x20] sm:$0xff] %v567
        %572 = vst [vmem:[%s201 + $0x28] sm:$0xff] %v568
        %s573 = sand.u32 %s82, 1
        %s574 = scalar_lea.sflag [#allocation4], %s573
        %s575 = sand.u32 %s82, 1
        %s576 = smul.addr %s575, 48
        %s577 = scalar_lea.vmem [#allocation7], %s576
        // Predicated region
        $region37: #{tpu_custom_call.1} parent=27 // pred_check
          %p578 = pneg %p92
        $region38: #{tpu_custom_call.1} parent=27 // pred_check_branch
          %580 = sbr.rel (%p578) target = $region40
        $region39: #{tpu_custom_call.1} parent=27 // pred_region
          %s582 = ssub.s32 768, 768
          %583 = vsyncadd %s574, %s582
          %s584 = smul.addr %s22, 6
          %s585 = smul.addr %s584, 128
          %s586 = scalar_lea.hbm %s2, %s585
          %s587 = sshll.u32 %s577, 4
          %s588 = int_to_ptr.vmem [resolvable:$true] %s587
          %593 = dma.vmem_to_hbm [thread:$0]  %s588, 768, %s586, %s574, 128, 128, 8
        $region40: #{tpu_custom_call.1} parent=27 // pred_fallthru
          _
      $region28: #{tpu_custom_call.1} parent=5 // pred_fallthru
        _
      %p594 = scmp.le.s32.totalorder 2, %s17
      // Predicated region
      $region41: #{tpu_custom_call.1} parent=5 // pred_check
        %p595 = pneg %p594
      $region42: #{tpu_custom_call.1} parent=5 // pred_check_branch
        %597 = sbr.rel (%p595) target = $region44
      $region43: #{tpu_custom_call.1} parent=5 // pred_region
        %s598 = ssub.s32 %s17, 2
        // Predicated region
        $region45: #{tpu_custom_call.1} parent=43 // pred_check
          %p599 = pneg %p98
        $region46: #{tpu_custom_call.1} parent=43 // pred_check_branch
          %601 = sbr.rel (%p599) target = $region48
        $region47: #{tpu_custom_call.1} parent=43 // pred_region
          %s602 = sand.u32 %s83, 1
          %s603 = scalar_lea.sflag [#allocation4], %s602
          %s604 = sand.u32 %s83, 1
          %s605 = smul.addr %s604, 48
          %s606 = scalar_lea.vmem [#allocation7], %s605
          %607 = dma.done %s603, 768
        $region48: #{tpu_custom_call.1} parent=43 // pred_fallthru
          _
      $region44: #{tpu_custom_call.1} parent=5 // pred_fallthru
        _
    $region6: #{tpu_custom_call.1} parent=1 // loop_footer
      %s21 = sadd.s32 1, %s17
    $region7: #{tpu_custom_call.1} parent=1 // loop_footer_branch
      %16 = sbr.rel target = $region3
    $region8: #{tpu_custom_call.1} parent=1 // loop_exit
      _
    %608 = vsyncpa [#allocation3], 1
    %s609 = scalar_lea.sflag [#allocation3], 1
    %610 = vsyncpa %s609, 1
    %611 = vsyncpa [#allocation6], 1
    %s612 = scalar_lea.sflag [#allocation6], 1
    %613 = vsyncpa %s612, 1
    %614 = vsyncpa [#allocation4], 1
    %s615 = scalar_lea.sflag [#allocation4], 1
    %616 = vsyncpa %s615, 1

</llo_original>
